<compile_context>
chip_gen: v7x
topology: tpu7x:2x2x1
jax: 0.10.0
libtpu: 0.0.40
codegen_flags: <defaults>
</compile_context>

<pallas_src>
import jax
import jax.numpy as jnp
from jax.experimental import pallas as pl
from jax.experimental.pallas import tpu as pltpu


# ---------------------------------------------------------------------------
# Kernels
# ---------------------------------------------------------------------------

def _linear_kernel_fused(x_ref, w_ref, b_ref, o_ref):
    """Whole reduction in one block: y = x @ W_t + b (W_t is [in, out])."""
    acc = jnp.dot(x_ref[...], w_ref[...], preferred_element_type=jnp.float32)
    o_ref[...] = (acc + b_ref[...]).astype(o_ref.dtype)  # bias is f32


def _linear_kernel_tiled(x_ref, w_ref, b_ref, o_ref, acc_ref):
    """Fallback for very large V: K-tiled reduction with f32 accumulator."""
    k = pl.program_id(2)

    @pl.when(k == 0)
    def _():
        # Fold the f32 bias into the accumulator init (no epilogue add).
        acc_ref[...] = jnp.broadcast_to(b_ref[...], acc_ref.shape)

    acc_ref[...] += jnp.dot(x_ref[...], w_ref[...],
                            preferred_element_type=jnp.float32)

    @pl.when(k == pl.num_programs(2) - 1)
    def _():
        o_ref[...] = acc_ref[...].astype(o_ref.dtype)


# ---------------------------------------------------------------------------
# Helpers
# ---------------------------------------------------------------------------

def _vmem_capacity_bytes():
    """Per-core VMEM capacity; conservative 64 MiB fallback (safe on v7x)."""
    try:
        return int(pltpu.get_tpu_info().vmem_capacity_bytes)
    except Exception:
        return 64 * 1024 * 1024


def _choose_tm(mp, tm_desired):
    """Balanced row tiling.

    Returns (tm, pad) with tm a multiple of 8 and (mp + pad) % tm == 0.
    Prefers an even number of row tiles (>= 2) so both v7x TensorCores get
    work under dimension_semantics=('parallel',), and prefers a small pad
    over tiny exact-divisor tiles (per-step overhead / MXU under-fill).
    """
    if mp <= 8:
        return mp, 0
    tm_desired = max(8, tm_desired)
    ntiles = max(2, pl.cdiv(mp, tm_desired))
    if ntiles % 2:
        ntiles += 1
    tm = pl.cdiv(pl.cdiv(mp, ntiles), 8) * 8
    return tm, ntiles * tm - mp


def _const_spec(block_shape, index_map):
    """BlockSpec for a block whose index_map is constant: single-buffer it."""
    if hasattr(pl, "Buffered"):
        try:
            return pl.BlockSpec(block_shape, index_map,
                                pipeline_mode=pl.Buffered(1))
        except TypeError:
            pass
    return pl.BlockSpec(block_shape, index_map)


# ---------------------------------------------------------------------------
# Wrapper
# ---------------------------------------------------------------------------

def linear_embedding(x, weight, bias, *, tm=512, tn=None, tk=None,
                     compute_dtype=jnp.bfloat16):
    """y = x @ weight.T + bias  (x: [..., V], weight: [V_out, V_in], bias: [V_out]).

    compute_dtype (default bfloat16) is the MXU input dtype for x and W;
    accumulation is f32, bias is added in f32, output keeps x.dtype.
    Pass compute_dtype=jnp.float32 (or None to keep x.dtype) for exact f32.
    """
    orig_shape = x.shape
    V = orig_shape[-1]
    assert weight.shape == (V, V) and bias.shape == (V,)

    out_dtype = x.dtype
    cdt = jnp.dtype(compute_dtype) if compute_dtype is not None else jnp.dtype(x.dtype)

    x2d = x.reshape(-1, V).astype(cdt)
    # One-time wrapper-side transpose: kernel contracts W_t's dim 0 (plain NN
    # matmul, no per-step in-kernel transpose of the resident weight tile).
    w_t = weight.astype(cdt).T                      # [V_in, V_out]
    b2d = bias.astype(jnp.float32).reshape(1, V)    # f32 bias, added in f32

    M = x2d.shape[0]
    mp8 = pl.cdiv(M, 8) * 8
    tm, extra = _choose_tm(mp8, tm)
    Mp = mp8 + extra
    if Mp != M:
        x2d = jnp.pad(x2d, ((0, Mp - M), (0, 0)))
    grid_m = Mp // tm

    xb = x2d.dtype.itemsize
    wb = w_t.dtype.itemsize
    ob = jnp.dtype(out_dtype).itemsize

    cost = pl.CostEstimate(
        flops=2 * Mp * V * V,
        transcendentals=0,
        bytes_accessed=Mp * V * xb + V * V * wb + V * 4 + Mp * V * ob,
    )

    vmem_cap = _vmem_capacity_bytes()

    def _est_fused(single_buffer):
        wbuf = 1 if single_buffer else 2
        return (2 * tm * V * xb          # double-buffered x row tiles
                + 2 * tm * V * ob        # double-buffered out row tiles
                + wbuf * V * V * wb      # resident weight
                + 2 * V * 4)             # bias

    can_single_buffer = hasattr(pl, "Buffered")
    est_single = _est_fused(can_single_buffer)
    # Generation-gated: ~96 MiB on v5e/v6e (128 MiB VMEM), ~48 MiB on v7x.
    use_single = (tn is None and tk is None
                  and est_single <= int(0.75 * vmem_cap))

    if use_single:
        def _run_fused(single_buffer):
            est = _est_fused(single_buffer)
            vmem_limit = min(vmem_cap, max(int(1.5 * est), 32 * 1024 * 1024))
            make_spec = _const_spec if single_buffer else pl.BlockSpec
            return pl.pallas_call(
                _linear_kernel_fused,
                out_shape=jax.ShapeDtypeStruct((Mp, V), out_dtype),
                grid_spec=pltpu.PrefetchScalarGridSpec(
                    num_scalar_prefetch=0,
                    grid=(grid_m,),
                    in_specs=[
                        pl.BlockSpec((tm, V), lambda i: (i, 0)),   # x row tile
                        make_spec((V, V), lambda i: (0, 0)),       # resident W_t
                        make_spec((1, V), lambda i: (0, 0)),       # bias (f32)
                    ],
                    out_specs=pl.BlockSpec((tm, V), lambda i: (i, 0)),
                ),
                compiler_params=pltpu.CompilerParams(
                    dimension_semantics=("parallel",),
                    vmem_limit_bytes=vmem_limit,
                ),
                cost_estimate=cost,
            )(x2d, w_t, b2d)

        # TODO(synk): for repeated calls with the same weight, keep W_t resident
        # across pallas_calls (cross-call semaphore-future prefetch) instead of
        # re-streaming V^2 bytes per call.
        # TODO(synk): on v7x, offer an fp8 weight path (per-output-channel scale
        # folded into the f32 epilogue) to double MXU throughput vs bf16.
        try:
            out = _run_fused(can_single_buffer)
        except Exception:
            if not can_single_buffer:
                raise
            out = _run_fused(False)   # fall back to default double-buffering
    else:
        # Tiled fallback for very large V (weight block does not fit VMEM).
        if tn is None or tk is None:
            for cand in (512, 256, 128):
                if V % cand == 0:
                    tn = tn or cand
                    tk = tk or cand
                    break
            else:
                tn = tn or V
                tk = tk or V
        assert V % tn == 0 and V % tk == 0

        est_tiled = (2 * (tm * tk * xb + tk * tn * wb + tm * tn * ob + tn * 4)
                     + tm * tn * 4)
        vmem_limit = min(vmem_cap, max(int(1.5 * est_tiled), 32 * 1024 * 1024))

        # TODO(synk): on bandwidth-poor v5e, restructure this fallback to hold a
        # full-K (V, tn) weight strip resident (Buffered(1)) so weight HBM
        # traffic is not multiplied by grid_m.
        out = pl.pallas_call(
            _linear_kernel_tiled,
            out_shape=jax.ShapeDtypeStruct((Mp, V), out_dtype),
            grid_spec=pltpu.PrefetchScalarGridSpec(
                num_scalar_prefetch=0,
                grid=(grid_m, V // tn, V // tk),
                in_specs=[
                    pl.BlockSpec((tm, tk), lambda i, j, k: (i, k)),  # x tile
                    pl.BlockSpec((tk, tn), lambda i, j, k: (k, j)),  # W_t tile
                    pl.BlockSpec((1, tn), lambda i, j, k: (0, j)),   # bias tile
                ],
                out_specs=pl.BlockSpec((tm, tn), lambda i, j, k: (i, j)),
                scratch_shapes=[pltpu.VMEM((tm, tn), jnp.float32)],
            ),
            compiler_params=pltpu.CompilerParams(
                dimension_semantics=("parallel", "parallel", "arbitrary"),
                vmem_limit_bytes=vmem_limit,
            ),
            cost_estimate=cost,
        )(x2d, w_t, b2d)

    if Mp != M:
        out = out[:M]
    return out.reshape(orig_shape[:-1] + (V,))


def init_linear_params(vector_size, key):
    """Deterministic init matching nn.Linear's shapes (weight [out,in], bias [out])."""
    kw, kb = jax.random.split(key)
    bound = 1.0 / (vector_size ** 0.5)
    weight = jax.random.uniform(
        kw, (vector_size, vector_size), jnp.float32, -bound, bound
    )
    bias = jax.random.uniform(kb, (vector_size,), jnp.float32, -bound, bound)
    return weight, bias


if __name__ == "__main__":
    # Small shapes consistent with the module: (batch, token_num, vector_size)
    batch, token_num, vector_size = 2, 8, 256

    key = jax.random.PRNGKey(0)
    kx, kp = jax.random.split(key)
    x = jax.random.normal(kx, (batch, token_num, vector_size), jnp.float32)
    weight, bias = init_linear_params(vector_size, kp)
    y_ref = x @ weight.T + bias

    # Production default: bf16 MXU inputs, f32 accumulation, f32 output.
    y = jax.block_until_ready(linear_embedding(x, weight, bias))
    assert y.shape == (batch, token_num, vector_size)
    assert jnp.allclose(y, y_ref, atol=5e-2, rtol=5e-2), \
        float(jnp.max(jnp.abs(y - y_ref)))

    # Full-f32 path: exact-ish against the plain JAX reference.
    y_f32 = jax.block_until_ready(
        linear_embedding(x, weight, bias, compute_dtype=jnp.float32)
    )
    assert jnp.allclose(y_f32, y_ref, atol=1e-4, rtol=1e-4)

    print("KERNEL_OK")
</pallas_src>

<mosaic_0001>
module attributes {stable_mosaic.version = 11 : i64} {
  func.func @_linear_kernel_fused(%arg0: i32, %arg1: memref<8x256xbf16, #tpu.memory_space<vmem>>, %arg2: memref<256x256xbf16, #tpu.memory_space<vmem>>, %arg3: memref<1x256xf32, #tpu.memory_space<vmem>>, %arg4: memref<8x256xf32, #tpu.memory_space<vmem>>) attributes {dimension_semantics = [#tpu.dimension_semantics<parallel>], iteration_bounds = array<i64: 2>, scalar_prefetch = 0 : i64, scratch_operands = 0 : i64, tpu.core_type = #tpu.core_type<tc>, window_params = [{transform_indices = @transform_0, window_bounds = array<i64: 8, 256>}, {pipeline_mode = #tpu.pipeline_mode<synchronous>, transform_indices = @transform_1, window_bounds = array<i64: 256, 256>}, {pipeline_mode = #tpu.pipeline_mode<synchronous>, transform_indices = @transform_2, window_bounds = array<i64: 1, 256>}, {transform_indices = @transform_3, window_bounds = array<i64: 8, 256>}]} {
    %c0 = arith.constant 0 : index
    %c0_0 = arith.constant 0 : index
    %0 = vector.load %arg1[%c0, %c0_0] : memref<8x256xbf16, #tpu.memory_space<vmem>>, vector<8x256xbf16>
    %c0_1 = arith.constant 0 : index
    %c0_2 = arith.constant 0 : index
    %1 = vector.load %arg2[%c0_1, %c0_2] : memref<256x256xbf16, #tpu.memory_space<vmem>>, vector<256x256xbf16>
    %cst = arith.constant dense<0.000000e+00> : vector<8x256xf32>
    %2 = tpu.matmul %0, %1, %cst {dimension_numbers = #tpu.dot_dimension_numbers<[1], [0], [0], [1], [0, 0, 1, 1], [], []>} : vector<8x256xbf16>, vector<256x256xbf16>, vector<8x256xf32> -> vector<8x256xf32>
    %c0_3 = arith.constant 0 : index
    %c0_4 = arith.constant 0 : index
    %3 = vector.load %arg3[%c0_3, %c0_4] : memref<1x256xf32, #tpu.memory_space<vmem>>, vector<1x256xf32>
    %4 = vector.broadcast %3 : vector<1x256xf32> to vector<8x256xf32>
    %5 = arith.addf %2, %4 : vector<8x256xf32>
    %c0_5 = arith.constant 0 : index
    %c0_6 = arith.constant 0 : index
    %6 = vector.load %arg4[%c0_5, %c0_6] : memref<8x256xf32, #tpu.memory_space<vmem>>, vector<8x256xf32>
    tpu.vector_store %arg4[%c0_5, %c0_6], %5 {strides = array<i32>} : memref<8x256xf32, #tpu.memory_space<vmem>>, vector<8x256xf32>,
    return
  }
  func.func @transform_0(%arg0: i32) -> (i32, i32) {
    %c0_i32 = arith.constant 0 : i32
    %c0_i32_0 = arith.constant 0 : i32
    return %arg0, %c0_i32 : i32, i32
  }
  func.func @transform_1(%arg0: i32) -> (i32, i32) {
    %c0_i32 = arith.constant 0 : i32
    %c0_i32_0 = arith.constant 0 : i32
    %c0_i32_1 = arith.constant 0 : i32
    return %c0_i32, %c0_i32_0 : i32, i32
  }
  func.func @transform_2(%arg0: i32) -> (i32, i32) {
    %c0_i32 = arith.constant 0 : i32
    %c0_i32_0 = arith.constant 0 : i32
    %c0_i32_1 = arith.constant 0 : i32
    return %c0_i32, %c0_i32_0 : i32, i32
  }
  func.func @transform_3(%arg0: i32) -> (i32, i32) {
    %c0_i32 = arith.constant 0 : i32
    %c0_i32_0 = arith.constant 0 : i32
    return %arg0, %c0_i32 : i32, i32
  }
}

module attributes {stable_mosaic.version = 11 : i64} {
  func.func @_linear_kernel_fused(%arg0: i32, %arg1: memref<8x256xbf16, #tpu.memory_space<vmem>>, %arg2: memref<256x256xbf16, #tpu.memory_space<vmem>>, %arg3: memref<1x256xf32, #tpu.memory_space<vmem>>, %arg4: memref<8x256xf32, #tpu.memory_space<vmem>>) attributes {dimension_semantics = [#tpu.dimension_semantics<parallel>], iteration_bounds = array<i64: 2>, scalar_prefetch = 0 : i64, scratch_operands = 0 : i64, tpu.core_type = #tpu.core_type<tc>, window_params = [{transform_indices = @transform_0, window_bounds = array<i64: 8, 256>}, {pipeline_mode = #tpu.pipeline_mode<synchronous>, transform_indices = @transform_1, window_bounds = array<i64: 256, 256>}, {pipeline_mode = #tpu.pipeline_mode<synchronous>, transform_indices = @transform_2, window_bounds = array<i64: 1, 256>}, {transform_indices = @transform_3, window_bounds = array<i64: 8, 256>}]} {
    %c0 = arith.constant 0 : index
    %c0_0 = arith.constant 0 : index
    %0 = vector.load %arg1[%c0, %c0_0] : memref<8x256xbf16, #tpu.memory_space<vmem>>, vector<8x256xbf16>
    %c0_1 = arith.constant 0 : index
    %c0_2 = arith.constant 0 : index
    %1 = vector.load %arg2[%c0_1, %c0_2] : memref<256x256xbf16, #tpu.memory_space<vmem>>, vector<256x256xbf16>
    %cst = arith.constant dense<0.000000e+00> : vector<8x256xf32>
    %2 = tpu.matmul %0, %1, %cst {dimension_numbers = #tpu.dot_dimension_numbers<[1], [0], [0], [1], [0, 0, 1, 1], [], []>} : vector<8x256xbf16>, vector<256x256xbf16>, vector<8x256xf32> -> vector<8x256xf32>
    %c0_3 = arith.constant 0 : index
    %c0_4 = arith.constant 0 : index
    %3 = vector.load %arg3[%c0_3, %c0_4] : memref<1x256xf32, #tpu.memory_space<vmem>>, vector<1x256xf32>
    %4 = vector.broadcast %3 : vector<1x256xf32> to vector<8x256xf32>
    %5 = arith.addf %2, %4 : vector<8x256xf32>
    %c0_5 = arith.constant 0 : index
    %c0_6 = arith.constant 0 : index
    %6 = vector.load %arg4[%c0_5, %c0_6] : memref<8x256xf32, #tpu.memory_space<vmem>>, vector<8x256xf32>
    tpu.vector_store %arg4[%c0_5, %c0_6], %5 {strides = array<i32>} : memref<8x256xf32, #tpu.memory_space<vmem>>, vector<8x256xf32>,
    return
  }
  func.func @transform_0(%arg0: i32) -> (i32, i32) {
    %c0_i32 = arith.constant 0 : i32
    %c0_i32_0 = arith.constant 0 : i32
    return %arg0, %c0_i32 : i32, i32
  }
  func.func @transform_1(%arg0: i32) -> (i32, i32) {
    %c0_i32 = arith.constant 0 : i32
    %c0_i32_0 = arith.constant 0 : i32
    %c0_i32_1 = arith.constant 0 : i32
    return %c0_i32, %c0_i32_0 : i32, i32
  }
  func.func @transform_2(%arg0: i32) -> (i32, i32) {
    %c0_i32 = arith.constant 0 : i32
    %c0_i32_0 = arith.constant 0 : i32
    %c0_i32_1 = arith.constant 0 : i32
    return %c0_i32, %c0_i32_0 : i32, i32
  }
  func.func @transform_3(%arg0: i32) -> (i32, i32) {
    %c0_i32 = arith.constant 0 : i32
    %c0_i32_0 = arith.constant 0 : i32
    return %arg0, %c0_i32 : i32, i32
  }
}

</mosaic_0001>

<llo_original>
// kernel: tpu_custom_call.1
$region0: #{tpu_custom_call.1}
  #allocation0 [shape = 'u32[]', space=smem, size = 0x4, offset = 0x4, fixed_abs, tag = 'smem constant byte address 0x4 - core index']
  #allocation1 [shape = 'u32[144,128]{1,0:T(1,128)}', space=vmem, size = 0x12000, scoped, tag = 'internal scratch']
  %s0 = inlined_call_operand.hbm [shape: bf16[16,256], index: 0, kind: input, shape index: {}]
  %s1 = inlined_call_operand.hbm [shape: bf16[256,256], index: 1, kind: input, shape index: {}]
  %s2 = inlined_call_operand.vmem [shape: f32[1,256], index: 2, kind: input, shape index: {}]
  %s3 = inlined_call_operand.hbm [shape: f32[16,256], index: 3, kind: output, shape index: {}]
  %s4 = sld [smem:[#allocation0]]
  $region53: #{tpu_custom_call.1} parent=0
    _
  %s6 = ssub.s32 1, %s4
  %s7 = scalar_select 0, %s6, %s4
  $region1: #{tpu_custom_call.1} parent=0
    #allocation2 [shape = 'u8[8192]{0}', space=vmem, size = 0x2000, scoped, tag = 'input window, operand 0']
    #allocation3 [shape = 's32[2]{0}', space=sflag, size = 0x8, scoped, tag = 'scoped memory for tpu_custom_call.1']
    #allocation4 [shape = 's32[2]{0}', space=sflag, size = 0x8, scoped, tag = 'scoped memory for tpu_custom_call.1']
    #allocation5 [shape = 'u8[131072]{0}', space=vmem, size = 0x20000, scoped, tag = 'input window, operand 1, single buffered']
    #allocation6 [shape = 's32[1]{0}', space=sflag, size = 0x4, scoped, tag = 'scoped memory for tpu_custom_call.1']
    #allocation7 [shape = 'u8[16384]{0}', space=vmem, size = 0x4000, scoped, tag = 'output window, operand 0']
    %8 = vsyncpa [#allocation3], 0
    %s9 = scalar_lea.sflag [#allocation3], 1
    %10 = vsyncpa %s9, 0
    %11 = vsyncpa [#allocation6], 0
    %12 = vsyncpa [#allocation4], 0
    %s13 = scalar_lea.sflag [#allocation4], 1
    %14 = vsyncpa %s13, 0
    loop: start=0, step=1, limit=4
    $region2: #{tpu_custom_call.1} parent=1 // loop_pre_header
      _
    $region3: #{tpu_custom_call.1} parent=1 // loop_header
      %s16 = sphi 0, %s20
      %p17 = scmp.ge.s32.totalorder %s16, 4
      %s26 = sphi 0, %s28
      %s29 = sphi 0, %s26
      %s30 = sphi 0, %s29
      %s46 = sphi 0, %s30
      %s50 = sphi 0, %s50
      %s52 = sphi 0, %s50
      %s53 = sphi 0, %s52
      %s67 = sphi 0, %s53
      %s71 = sphi 0, %s71
      %s73 = sphi 0, %s71
      %s74 = sphi 0, %s73
      %s88 = sphi 0, %s74
      %s94 = sphi 0, %s96
      %s97 = sphi 0, %s94
      %s98 = sphi 0, %s97
      %s114 = sphi 0, %s98
    $region4: #{tpu_custom_call.1} parent=1 // loop_header_branch
      %19 = sbr.rel (%p17) target = $region8
    $region5: #{tpu_custom_call.1} parent=1 // loop_body
      %s21 = ssub.s32 %s16, 1
      %s22 = ssub.s32 %s16, 2
      %s23 = sadd.s32 %s16, 1
      %s24 = ssub.s32 %s16, %s23
      %p25 = scmp.eq.s32.totalorder %s24, 0
      %s27 = sadd.s32 %s26, 1
      %s28 = scalar_select %p25, %s26, %s27
      %p31 = pneg %p25
      %p32 = scmp.eq.s32.totalorder %s16, 1
      %p33 = por %p31, %p32
      %p34 = scmp.ne.s32.totalorder %s26, %s29
      %p35 = scmp.eq.s32.totalorder %s16, 0
      %p36 = por %p34, %p35
      %p37 = scmp.ne.s32.totalorder %s26, %s29
      %p38 = scmp.eq.s32.totalorder %s21, 1
      %p39 = por %p37, %p38
      %p40 = scmp.ne.s32.totalorder %s29, %s30
      %p41 = scmp.eq.s32.totalorder %s21, 0
      %p42 = por %p40, %p41
      %p43 = scmp.ne.s32.totalorder %s29, %s30
      %p44 = scmp.eq.s32.totalorder %s22, 1
      %p45 = por %p43, %p44
      %p47 = scmp.ne.s32.totalorder %s30, %s46
      %p48 = scmp.eq.s32.totalorder %s22, 0
      %p49 = por %p47, %p48
      %s51 = sadd.s32 %s50, 1
      %p54 = scmp.eq.s32.totalorder %s16, 1
      %p55 = scmp.ne.s32.totalorder %s50, %s52
      %p56 = scmp.eq.s32.totalorder %s16, 0
      %p57 = por %p55, %p56
      %p58 = scmp.ne.s32.totalorder %s50, %s52
      %p59 = scmp.eq.s32.totalorder %s21, 1
      %p60 = por %p58, %p59
      %p61 = scmp.ne.s32.totalorder %s52, %s53
      %p62 = scmp.eq.s32.totalorder %s21, 0
      %p63 = por %p61, %p62
      %p64 = scmp.ne.s32.totalorder %s52, %s53
      %p65 = scmp.eq.s32.totalorder %s22, 1
      %p66 = por %p64, %p65
      %p68 = scmp.ne.s32.totalorder %s53, %s67
      %p69 = scmp.eq.s32.totalorder %s22, 0
      %p70 = por %p68, %p69
      %s72 = sadd.s32 %s71, 1
      %p75 = scmp.eq.s32.totalorder %s16, 1
      %p76 = scmp.ne.s32.totalorder %s71, %s73
      %p77 = scmp.eq.s32.totalorder %s16, 0
      %p78 = por %p76, %p77
      %p79 = scmp.ne.s32.totalorder %s71, %s73
      %p80 = scmp.eq.s32.totalorder %s21, 1
      %p81 = por %p79, %p80
      %p82 = scmp.ne.s32.totalorder %s73, %s74
      %p83 = scmp.eq.s32.totalorder %s21, 0
      %p84 = por %p82, %p83
      %p85 = scmp.ne.s32.totalorder %s73, %s74
      %p86 = scmp.eq.s32.totalorder %s22, 1
      %p87 = por %p85, %p86
      %p89 = scmp.ne.s32.totalorder %s74, %s88
      %p90 = scmp.eq.s32.totalorder %s22, 0
      %p91 = por %p89, %p90
      %s92 = ssub.s32 %s16, %s23
      %p93 = scmp.eq.s32.totalorder %s92, 0
      %s95 = sadd.s32 %s94, 1
      %s96 = scalar_select %p93, %s94, %s95
      %p99 = pneg %p93
      %p100 = scmp.eq.s32.totalorder %s16, 1
      %p101 = por %p99, %p100
      %p102 = scmp.ne.s32.totalorder %s94, %s97
      %p103 = scmp.eq.s32.totalorder %s16, 0
      %p104 = por %p102, %p103
      %p105 = scmp.ne.s32.totalorder %s94, %s97
      %p106 = scmp.eq.s32.totalorder %s21, 1
      %p107 = por %p105, %p106
      %p108 = scmp.ne.s32.totalorder %s97, %s98
      %p109 = scmp.eq.s32.totalorder %s21, 0
      %p110 = por %p108, %p109
      %p111 = scmp.ne.s32.totalorder %s97, %s98
      %p112 = scmp.eq.s32.totalorder %s22, 1
      %p113 = por %p111, %p112
      %p115 = scmp.ne.s32.totalorder %s98, %s114
      %p116 = scmp.eq.s32.totalorder %s22, 0
      %p117 = por %p115, %p116
      %p118 = scmp.le.s32.totalorder 1, %s16
      %p119 = scmp.lt.s32.totalorder %s16, 3
      %p120 = pnand %p118, %p119
      %p121 = pneg %p120
      // Predicated region
      $region9: #{tpu_custom_call.1} parent=5 // pred_check
        _
      $region10: #{tpu_custom_call.1} parent=5 // pred_check_branch
        %123 = sbr.rel (%p120) target = $region12
      $region11: #{tpu_custom_call.1} parent=5 // pred_region
        %s124 = ssub.s32 %s16, 1
        // Predicated region
        $region13: #{tpu_custom_call.1} parent=11 // pred_check
          %p125 = pneg %p63
        $region14: #{tpu_custom_call.1} parent=11 // pred_check_branch
          %127 = sbr.rel (%p125) target = $region16
        $region15: #{tpu_custom_call.1} parent=11 // pred_region
          %s129 = ssub.s32 4096, 4096
          %130 = vsyncadd [#allocation6], %s129
          %s131 = sshll.u32 [#allocation5], 4
          %s132 = int_to_ptr.vmem [resolvable:$true] %s131
          %137 = dma.hbm_to_vmem [thread:$0]  %s1, 4096, %s132, [#allocation6], 128, 128, 8
        $region16: #{tpu_custom_call.1} parent=11 // pred_fallthru
          _
        // Predicated region
        $region17: #{tpu_custom_call.1} parent=11 // pred_check
          %p138 = pneg %p84
        $region18: #{tpu_custom_call.1} parent=11 // pred_check_branch
          %140 = sbr.rel (%p138) target = $region20
        $region19: #{tpu_custom_call.1} parent=11 // pred_region
          _
        $region20: #{tpu_custom_call.1} parent=11 // pred_fallthru
          _
      $region12: #{tpu_custom_call.1} parent=5 // pred_fallthru
        _
      %p141 = scmp.lt.s32.totalorder %s16, 2
      // Predicated region
      $region21: #{tpu_custom_call.1} parent=5 // pred_check
        %p142 = pneg %p141
      $region22: #{tpu_custom_call.1} parent=5 // pred_check_branch
        %144 = sbr.rel (%p142) target = $region24
      $region23: #{tpu_custom_call.1} parent=5 // pred_region
        // Predicated region
        $region25: #{tpu_custom_call.1} parent=23 // pred_check
          %p145 = pneg %p36
        $region26: #{tpu_custom_call.1} parent=23 // pred_check_branch
          %147 = sbr.rel (%p145) target = $region28
        $region27: #{tpu_custom_call.1} parent=23 // pred_region
          %s148 = sand.u32 %s26, 1
          %s149 = scalar_lea.sflag [#allocation3], %s148
          %s150 = sand.u32 %s26, 1
          %s151 = smul.addr %s150, 8
          %s152 = scalar_lea.vmem [#allocation2], %s151
          %s154 = ssub.s32 128, 128
          %155 = vsyncadd %s149, %s154
          %s156 = smul.addr %s16, 2
          %s157 = smul.addr %s156, 64
          %s158 = scalar_lea.hbm %s0, %s157
          %s160 = sshll.u32 %s152, 4
          %s161 = int_to_ptr.vmem [resolvable:$true] %s160
          %163 = dma.hbm_to_vmem [thread:$0]  %s158, 128, %s161, %s149
        $region28: #{tpu_custom_call.1} parent=23 // pred_fallthru
          _
      $region24: #{tpu_custom_call.1} parent=5 // pred_fallthru
        _
      %p164 = scmp.le.s32.totalorder 1, %s16
      %p165 = scmp.lt.s32.totalorder %s16, 3
      %p166 = pnand %p164, %p165
      %p167 = pneg %p166
      // Predicated region
      $region29: #{tpu_custom_call.1} parent=5 // pred_check
        _
      $region30: #{tpu_custom_call.1} parent=5 // pred_check_branch
        %169 = sbr.rel (%p166) target = $region32
      $region31: #{tpu_custom_call.1} parent=5 // pred_region
        %s170 = ssub.s32 %s16, 1
        %s171 = sand.u32 %s29, 1
        %s172 = scalar_lea.sflag [#allocation3], %s171
        %s173 = sand.u32 %s29, 1
        %s174 = smul.addr %s173, 8
        %s175 = scalar_lea.vmem [#allocation2], %s174
        // Predicated region
        $region33: #{tpu_custom_call.1} parent=31 // pred_check
          %p176 = pneg %p42
        $region34: #{tpu_custom_call.1} parent=31 // pred_check_branch
          %178 = sbr.rel (%p176) target = $region36
        $region35: #{tpu_custom_call.1} parent=31 // pred_region
          %179 = dma.done %s172, 128
        $region36: #{tpu_custom_call.1} parent=31 // pred_fallthru
          _
        // Predicated region
        $region37: #{tpu_custom_call.1} parent=31 // pred_check
          %p180 = pneg %p63
        $region38: #{tpu_custom_call.1} parent=31 // pred_check_branch
          %182 = sbr.rel (%p180) target = $region40
        $region39: #{tpu_custom_call.1} parent=31 // pred_region
          %183 = dma.done [#allocation6], 4096
        $region40: #{tpu_custom_call.1} parent=31 // pred_fallthru
          _
        %s184 = sand.u32 %s29, 1
        %s185 = scalar_lea.sflag [#allocation3], %s184
        %s186 = sand.u32 %s29, 1
        %s187 = smul.addr %s186, 8
        %s188 = scalar_lea.vmem [#allocation2], %s187
        %p189 = pneg %p42
        %p190 = pneg %p39
        %p191 = pneg %p63
        %p192 = pneg %p60
        %p193 = pneg %p84
        %p194 = pneg %p81
        %p195 = pneg %p110
        %p196 = pneg %p107
        %s197 = sand.u32 %s97, 1
        %s198 = scalar_lea.sflag [#allocation4], %s197
        %s199 = sand.u32 %s97, 1
        %s200 = smul.addr %s199, 16
        %s201 = scalar_lea.vmem [#allocation7], %s200
        %v202 = vld [vmem:[%s175] sm:$0xff]
        %v203 = vld [vmem:[#allocation5] sm:$0xff]
        %v204 = vld [vmem:[#allocation5 + $0x8] sm:$0xff]
        %v205 = vld [vmem:[#allocation5 + $0x10] sm:$0xff]
        %v206 = vld [vmem:[#allocation5 + $0x18] sm:$0xff]
        %v207 = vld [vmem:[#allocation5 + $0x20] sm:$0xff]
        %v208 = vld [vmem:[#allocation5 + $0x28] sm:$0xff]
        %v209 = vld [vmem:[#allocation5 + $0x30] sm:$0xff]
        %v210 = vld [vmem:[#allocation5 + $0x38] sm:$0xff]
        %v211 = vld [vmem:[#allocation5 + $0x40] sm:$0xff]
        %v212 = vld [vmem:[#allocation5 + $0x48] sm:$0xff]
        %v213 = vld [vmem:[#allocation5 + $0x50] sm:$0xff]
        %v214 = vld [vmem:[#allocation5 + $0x58] sm:$0xff]
        %v215 = vld [vmem:[#allocation5 + $0x60] sm:$0xff]
        %v216 = vld [vmem:[#allocation5 + $0x68] sm:$0xff]
        %v217 = vld [vmem:[#allocation5 + $0x70] sm:$0xff]
        %v218 = vld [vmem:[#allocation5 + $0x78] sm:$0xff]
        %v219 = vld [vmem:[#allocation5 + $0x80] sm:$0xff]
        %v220 = vld [vmem:[#allocation5 + $0x88] sm:$0xff]
        %v221 = vld [vmem:[#allocation5 + $0x90] sm:$0xff]
        %v222 = vld [vmem:[#allocation5 + $0x98] sm:$0xff]
        %v223 = vld [vmem:[#allocation5 + $0xa0] sm:$0xff]
        %v224 = vld [vmem:[#allocation5 + $0xa8] sm:$0xff]
        %v225 = vld [vmem:[#allocation5 + $0xb0] sm:$0xff]
        %v226 = vld [vmem:[#allocation5 + $0xb8] sm:$0xff]
        %v227 = vld [vmem:[#allocation5 + $0xc0] sm:$0xff]
        %v228 = vld [vmem:[#allocation5 + $0xc8] sm:$0xff]
        %v229 = vld [vmem:[#allocation5 + $0xd0] sm:$0xff]
        %v230 = vld [vmem:[#allocation5 + $0xd8] sm:$0xff]
        %v231 = vld [vmem:[#allocation5 + $0xe0] sm:$0xff]
        %v232 = vld [vmem:[#allocation5 + $0xe8] sm:$0xff]
        %v233 = vld [vmem:[#allocation5 + $0xf0] sm:$0xff]
        %v234 = vld [vmem:[#allocation5 + $0xf8] sm:$0xff]
        %v235 = vld [vmem:[%s2] sm:$0x3]
        %v237 = vlaneseq
        %v238 = vshrl.u32 %v237, 7
        %v239 = vsub.s32 0, %v238
        %v240 = vrot.slane %v235, %v239
        %v241 = vlaneseq
        %v242 = vshrl.u32 %v241, 7
        %v243 = vsub.s32 1, %v242
        %v244 = vrot.slane %v235, %v243
        %v248 = vunpack.c.l.b16 %v202
        %v249 = vunpack.c.h.b16 %v202
        %v250 = vpack.c.b16 %v248, %v248
        %v251 = vpack.c.b16 %v249, %v249
        %v286 = vunpack.c.l.b16 %v203
        %v287 = vunpack.c.h.b16 %v203
        %v288 = vunpack.c.l.b16 %v204
        %v289 = vunpack.c.h.b16 %v204
        %v290 = vunpack.c.l.b16 %v205
        %v291 = vunpack.c.h.b16 %v205
        %v292 = vunpack.c.l.b16 %v206
        %v293 = vunpack.c.h.b16 %v206
        %v294 = vunpack.c.l.b16 %v207
        %v295 = vunpack.c.h.b16 %v207
        %v296 = vunpack.c.l.b16 %v208
        %v297 = vunpack.c.h.b16 %v208
        %v298 = vunpack.c.l.b16 %v209
        %v299 = vunpack.c.h.b16 %v209
        %v300 = vunpack.c.l.b16 %v210
        %v301 = vunpack.c.h.b16 %v210
        %v302 = vunpack.c.l.b16 %v211
        %v303 = vunpack.c.h.b16 %v211
        %v304 = vunpack.c.l.b16 %v212
        %v305 = vunpack.c.h.b16 %v212
        %v306 = vunpack.c.l.b16 %v213
        %v307 = vunpack.c.h.b16 %v213
        %v308 = vunpack.c.l.b16 %v214
        %v309 = vunpack.c.h.b16 %v214
        %v310 = vunpack.c.l.b16 %v215
        %v311 = vunpack.c.h.b16 %v215
        %v312 = vunpack.c.l.b16 %v216
        %v313 = vunpack.c.h.b16 %v216
        %v314 = vunpack.c.l.b16 %v217
        %v315 = vunpack.c.h.b16 %v217
        %v316 = vunpack.c.l.b16 %v218
        %v317 = vunpack.c.h.b16 %v218
        %v318 = vunpack.c.l.b16 %v219
        %v319 = vunpack.c.h.b16 %v219
        %v320 = vunpack.c.l.b16 %v220
        %v321 = vunpack.c.h.b16 %v220
        %v322 = vunpack.c.l.b16 %v221
        %v323 = vunpack.c.h.b16 %v221
        %v324 = vunpack.c.l.b16 %v222
        %v325 = vunpack.c.h.b16 %v222
        %v326 = vunpack.c.l.b16 %v223
        %v327 = vunpack.c.h.b16 %v223
        %v328 = vunpack.c.l.b16 %v224
        %v329 = vunpack.c.h.b16 %v224
        %v330 = vunpack.c.l.b16 %v225
        %v331 = vunpack.c.h.b16 %v225
        %v332 = vunpack.c.l.b16 %v226
        %v333 = vunpack.c.h.b16 %v226
        %v334 = vunpack.c.l.b16 %v227
        %v335 = vunpack.c.h.b16 %v227
        %v336 = vunpack.c.l.b16 %v228
        %v337 = vunpack.c.h.b16 %v228
        %v338 = vunpack.c.l.b16 %v229
        %v339 = vunpack.c.h.b16 %v229
        %v340 = vunpack.c.l.b16 %v230
        %v341 = vunpack.c.h.b16 %v230
        %v342 = vunpack.c.l.b16 %v231
        %v343 = vunpack.c.h.b16 %v231
        %v344 = vunpack.c.l.b16 %v232
        %v345 = vunpack.c.h.b16 %v232
        %v346 = vunpack.c.l.b16 %v233
        %v347 = vunpack.c.h.b16 %v233
        %v348 = vunpack.c.l.b16 %v234
        %v349 = vunpack.c.h.b16 %v234
        %v350 = vpack.c.b16 %v288, %v286
        %v351 = vpack.c.b16 %v289, %v287
        %v352 = vpack.c.b16 %v292, %v290
        %v353 = vpack.c.b16 %v293, %v291
        %v354 = vpack.c.b16 %v296, %v294
        %v355 = vpack.c.b16 %v297, %v295
        %v356 = vpack.c.b16 %v300, %v298
        %v357 = vpack.c.b16 %v301, %v299
        %v358 = vpack.c.b16 %v304, %v302
        %v359 = vpack.c.b16 %v305, %v303
        %v360 = vpack.c.b16 %v308, %v306
        %v361 = vpack.c.b16 %v309, %v307
        %v362 = vpack.c.b16 %v312, %v310
        %v363 = vpack.c.b16 %v313, %v311
        %v364 = vpack.c.b16 %v316, %v314
        %v365 = vpack.c.b16 %v317, %v315
        %v366 = vpack.c.b16 %v320, %v318
        %v367 = vpack.c.b16 %v321, %v319
        %v368 = vpack.c.b16 %v324, %v322
        %v369 = vpack.c.b16 %v325, %v323
        %v370 = vpack.c.b16 %v328, %v326
        %v371 = vpack.c.b16 %v329, %v327
        %v372 = vpack.c.b16 %v332, %v330
        %v373 = vpack.c.b16 %v333, %v331
        %v374 = vpack.c.b16 %v336, %v334
        %v375 = vpack.c.b16 %v337, %v335
        %v376 = vpack.c.b16 %v340, %v338
        %v377 = vpack.c.b16 %v341, %v339
        %v378 = vpack.c.b16 %v344, %v342
        %v379 = vpack.c.b16 %v345, %v343
        %v380 = vpack.c.b16 %v348, %v346
        %v381 = vpack.c.b16 %v349, %v347
        %414 = vmatprep.subr.bf16.mxu0 %v351
        %415 = vmatpush1.bf16.msra.mxu0 %v350
        %416 = vmatprep.subr.bf16.mxu0 %v353
        %417 = vmatpush1.bf16.msra.mxu0 %v352
        %418 = vmatprep.subr.bf16.mxu0 %v355
        %419 = vmatpush1.bf16.msra.mxu0 %v354
        %420 = vmatprep.subr.bf16.mxu0 %v357
        %421 = vmatpush1.bf16.msra.mxu0 %v356
        %422 = vmatprep.subr.bf16.mxu0 %v359
        %423 = vmatpush1.bf16.msra.mxu0 %v358
        %424 = vmatprep.subr.bf16.mxu0 %v361
        %425 = vmatpush1.bf16.msra.mxu0 %v360
        %426 = vmatprep.subr.bf16.mxu0 %v363
        %427 = vmatpush1.bf16.msra.mxu0 %v362
        %428 = vmatprep.subr.bf16.mxu0 %v365
        %429 = vmatpush1.bf16.msra.mxu0 %v364
        %430 = vmatprep.subr.bf16.mxu0 %v367
        %431 = vmatpush1.bf16.msra.mxu0 %v366
        %432 = vmatprep.subr.bf16.mxu0 %v369
        %433 = vmatpush1.bf16.msra.mxu0 %v368
        %434 = vmatprep.subr.bf16.mxu0 %v371
        %435 = vmatpush1.bf16.msra.mxu0 %v370
        %436 = vmatprep.subr.bf16.mxu0 %v373
        %437 = vmatpush1.bf16.msra.mxu0 %v372
        %438 = vmatprep.subr.bf16.mxu0 %v375
        %439 = vmatpush1.bf16.msra.mxu0 %v374
        %440 = vmatprep.subr.bf16.mxu0 %v377
        %441 = vmatpush1.bf16.msra.mxu0 %v376
        %442 = vmatprep.subr.bf16.mxu0 %v379
        %443 = vmatpush1.bf16.msra.mxu0 %v378
        %444 = vmatprep.subr.bf16.mxu0 %v381
        %445 = vmatpush1.bf16.msra.mxu0 %v380
        %446 = vmatprep.mubr.bf16.mxu0 %v251
        %447 = vmatmul.mubr.bf16.gmra.mrb[0].mxu0 %v250
        %v448 = vpop.f32.mrb[0].mxu0
        %v449 = vadd.f32 %v240, %v448
        %v450 = vpop.f32.mrb[0].mxu0
        %v451 = vadd.f32 %v244, %v450
        %v452 = vpop.f32.mrb[0].mxu0
        %v453 = vpop.f32.mrb[0].mxu0
        %454 = vdwg.mxu0
        %455 = vst [vmem:[%s201] sm:$0xff] %v449
        %456 = vst [vmem:[%s201 + $0x8] sm:$0xff] %v451
        %s457 = sand.u32 %s97, 1
        %s458 = scalar_lea.sflag [#allocation4], %s457
        %s459 = sand.u32 %s97, 1
        %s460 = smul.addr %s459, 16
        %s461 = scalar_lea.vmem [#allocation7], %s460
        // Predicated region
        $region41: #{tpu_custom_call.1} parent=31 // pred_check
          %p462 = pneg %p107
        $region42: #{tpu_custom_call.1} parent=31 // pred_check_branch
          %464 = sbr.rel (%p462) target = $region44
        $region43: #{tpu_custom_call.1} parent=31 // pred_region
          %s466 = ssub.s32 256, 256
          %467 = vsyncadd %s458, %s466
          %s468 = smul.addr %s21, 2
          %s469 = smul.addr %s468, 128
          %s470 = scalar_lea.hbm %s3, %s469
          %s472 = sshll.u32 %s461, 4
          %s473 = int_to_ptr.vmem [resolvable:$true] %s472
          %475 = dma.vmem_to_hbm [thread:$0]  %s473, 256, %s470, %s458
        $region44: #{tpu_custom_call.1} parent=31 // pred_fallthru
          _
      $region32: #{tpu_custom_call.1} parent=5 // pred_fallthru
        _
      %p476 = scmp.le.s32.totalorder 2, %s16
      // Predicated region
      $region45: #{tpu_custom_call.1} parent=5 // pred_check
        %p477 = pneg %p476
      $region46: #{tpu_custom_call.1} parent=5 // pred_check_branch
        %479 = sbr.rel (%p477) target = $region48
      $region47: #{tpu_custom_call.1} parent=5 // pred_region
        %s480 = ssub.s32 %s16, 2
        // Predicated region
        $region49: #{tpu_custom_call.1} parent=47 // pred_check
          %p481 = pneg %p113
        $region50: #{tpu_custom_call.1} parent=47 // pred_check_branch
          %483 = sbr.rel (%p481) target = $region52
        $region51: #{tpu_custom_call.1} parent=47 // pred_region
          %s484 = sand.u32 %s98, 1
          %s485 = scalar_lea.sflag [#allocation4], %s484
          %s486 = sand.u32 %s98, 1
          %s487 = smul.addr %s486, 16
          %s488 = scalar_lea.vmem [#allocation7], %s487
          %489 = dma.done %s485, 256
        $region52: #{tpu_custom_call.1} parent=47 // pred_fallthru
          _
      $region48: #{tpu_custom_call.1} parent=5 // pred_fallthru
        _
    $region6: #{tpu_custom_call.1} parent=1 // loop_footer
      %s20 = sadd.s32 1, %s16
    $region7: #{tpu_custom_call.1} parent=1 // loop_footer_branch
      %15 = sbr.rel target = $region3
    $region8: #{tpu_custom_call.1} parent=1 // loop_exit
      _
    %490 = vsyncpa [#allocation3], 1
    %s491 = scalar_lea.sflag [#allocation3], 1
    %492 = vsyncpa %s491, 1
    %493 = vsyncpa [#allocation6], 1
    %494 = vsyncpa [#allocation4], 1
    %s495 = scalar_lea.sflag [#allocation4], 1
    %496 = vsyncpa %s495, 1

// kernel: tpu_custom_call.1
$region0: #{tpu_custom_call.1}
  #allocation0 [shape = 'u32[]', space=smem, size = 0x4, offset = 0x4, fixed_abs, tag = 'smem constant byte address 0x4 - core index']
  #allocation1 [shape = 'u32[144,128]{1,0:T(1,128)}', space=vmem, size = 0x12000, scoped, tag = 'internal scratch']
  %s0 = inlined_call_operand.hbm [shape: bf16[16,256], index: 0, kind: input, shape index: {}]
  %s1 = inlined_call_operand.hbm [shape: bf16[256,256], index: 1, kind: input, shape index: {}]
  %s2 = inlined_call_operand.vmem [shape: f32[1,256], index: 2, kind: input, shape index: {}]
  %s3 = inlined_call_operand.hbm [shape: f32[16,256], index: 3, kind: output, shape index: {}]
  %s4 = sld [smem:[#allocation0]]
  $region53: #{tpu_custom_call.1} parent=0
    _
  %s6 = ssub.s32 1, %s4
  %s7 = scalar_select 0, %s6, %s4
  $region1: #{tpu_custom_call.1} parent=0
    #allocation2 [shape = 'u8[8192]{0}', space=vmem, size = 0x2000, scoped, tag = 'input window, operand 0']
    #allocation3 [shape = 's32[2]{0}', space=sflag, size = 0x8, scoped, tag = 'scoped memory for tpu_custom_call.1']
    #allocation4 [shape = 's32[2]{0}', space=sflag, size = 0x8, scoped, tag = 'scoped memory for tpu_custom_call.1']
    #allocation5 [shape = 'u8[131072]{0}', space=vmem, size = 0x20000, scoped, tag = 'input window, operand 1, single buffered']
    #allocation6 [shape = 's32[1]{0}', space=sflag, size = 0x4, scoped, tag = 'scoped memory for tpu_custom_call.1']
    #allocation7 [shape = 'u8[16384]{0}', space=vmem, size = 0x4000, scoped, tag = 'output window, operand 0']
    %8 = vsyncpa [#allocation3], 0
    %s9 = scalar_lea.sflag [#allocation3], 1
    %10 = vsyncpa %s9, 0
    %11 = vsyncpa [#allocation6], 0
    %12 = vsyncpa [#allocation4], 0
    %s13 = scalar_lea.sflag [#allocation4], 1
    %14 = vsyncpa %s13, 0
    loop: start=0, step=1, limit=4
    $region2: #{tpu_custom_call.1} parent=1 // loop_pre_header
      _
    $region3: #{tpu_custom_call.1} parent=1 // loop_header
      %s16 = sphi 0, %s20
      %p17 = scmp.ge.s32.totalorder %s16, 4
      %s26 = sphi 0, %s28
      %s29 = sphi 0, %s26
      %s30 = sphi 0, %s29
      %s46 = sphi 0, %s30
      %s50 = sphi 0, %s50
      %s52 = sphi 0, %s50
      %s53 = sphi 0, %s52
      %s67 = sphi 0, %s53
      %s71 = sphi 0, %s71
      %s73 = sphi 0, %s71
      %s74 = sphi 0, %s73
      %s88 = sphi 0, %s74
      %s94 = sphi 0, %s96
      %s97 = sphi 0, %s94
      %s98 = sphi 0, %s97
      %s114 = sphi 0, %s98
    $region4: #{tpu_custom_call.1} parent=1 // loop_header_branch
      %19 = sbr.rel (%p17) target = $region8
    $region5: #{tpu_custom_call.1} parent=1 // loop_body
      %s21 = ssub.s32 %s16, 1
      %s22 = ssub.s32 %s16, 2
      %s23 = sadd.s32 %s16, 1
      %s24 = ssub.s32 %s16, %s23
      %p25 = scmp.eq.s32.totalorder %s24, 0
      %s27 = sadd.s32 %s26, 1
      %s28 = scalar_select %p25, %s26, %s27
      %p31 = pneg %p25
      %p32 = scmp.eq.s32.totalorder %s16, 1
      %p33 = por %p31, %p32
      %p34 = scmp.ne.s32.totalorder %s26, %s29
      %p35 = scmp.eq.s32.totalorder %s16, 0
      %p36 = por %p34, %p35
      %p37 = scmp.ne.s32.totalorder %s26, %s29
      %p38 = scmp.eq.s32.totalorder %s21, 1
      %p39 = por %p37, %p38
      %p40 = scmp.ne.s32.totalorder %s29, %s30
      %p41 = scmp.eq.s32.totalorder %s21, 0
      %p42 = por %p40, %p41
      %p43 = scmp.ne.s32.totalorder %s29, %s30
      %p44 = scmp.eq.s32.totalorder %s22, 1
      %p45 = por %p43, %p44
      %p47 = scmp.ne.s32.totalorder %s30, %s46
      %p48 = scmp.eq.s32.totalorder %s22, 0
      %p49 = por %p47, %p48
      %s51 = sadd.s32 %s50, 1
      %p54 = scmp.eq.s32.totalorder %s16, 1
      %p55 = scmp.ne.s32.totalorder %s50, %s52
      %p56 = scmp.eq.s32.totalorder %s16, 0
      %p57 = por %p55, %p56
      %p58 = scmp.ne.s32.totalorder %s50, %s52
      %p59 = scmp.eq.s32.totalorder %s21, 1
      %p60 = por %p58, %p59
      %p61 = scmp.ne.s32.totalorder %s52, %s53
      %p62 = scmp.eq.s32.totalorder %s21, 0
      %p63 = por %p61, %p62
      %p64 = scmp.ne.s32.totalorder %s52, %s53
      %p65 = scmp.eq.s32.totalorder %s22, 1
      %p66 = por %p64, %p65
      %p68 = scmp.ne.s32.totalorder %s53, %s67
      %p69 = scmp.eq.s32.totalorder %s22, 0
      %p70 = por %p68, %p69
      %s72 = sadd.s32 %s71, 1
      %p75 = scmp.eq.s32.totalorder %s16, 1
      %p76 = scmp.ne.s32.totalorder %s71, %s73
      %p77 = scmp.eq.s32.totalorder %s16, 0
      %p78 = por %p76, %p77
      %p79 = scmp.ne.s32.totalorder %s71, %s73
      %p80 = scmp.eq.s32.totalorder %s21, 1
      %p81 = por %p79, %p80
      %p82 = scmp.ne.s32.totalorder %s73, %s74
      %p83 = scmp.eq.s32.totalorder %s21, 0
      %p84 = por %p82, %p83
      %p85 = scmp.ne.s32.totalorder %s73, %s74
      %p86 = scmp.eq.s32.totalorder %s22, 1
      %p87 = por %p85, %p86
      %p89 = scmp.ne.s32.totalorder %s74, %s88
      %p90 = scmp.eq.s32.totalorder %s22, 0
      %p91 = por %p89, %p90
      %s92 = ssub.s32 %s16, %s23
      %p93 = scmp.eq.s32.totalorder %s92, 0
      %s95 = sadd.s32 %s94, 1
      %s96 = scalar_select %p93, %s94, %s95
      %p99 = pneg %p93
      %p100 = scmp.eq.s32.totalorder %s16, 1
      %p101 = por %p99, %p100
      %p102 = scmp.ne.s32.totalorder %s94, %s97
      %p103 = scmp.eq.s32.totalorder %s16, 0
      %p104 = por %p102, %p103
      %p105 = scmp.ne.s32.totalorder %s94, %s97
      %p106 = scmp.eq.s32.totalorder %s21, 1
      %p107 = por %p105, %p106
      %p108 = scmp.ne.s32.totalorder %s97, %s98
      %p109 = scmp.eq.s32.totalorder %s21, 0
      %p110 = por %p108, %p109
      %p111 = scmp.ne.s32.totalorder %s97, %s98
      %p112 = scmp.eq.s32.totalorder %s22, 1
      %p113 = por %p111, %p112
      %p115 = scmp.ne.s32.totalorder %s98, %s114
      %p116 = scmp.eq.s32.totalorder %s22, 0
      %p117 = por %p115, %p116
      %p118 = scmp.le.s32.totalorder 1, %s16
      %p119 = scmp.lt.s32.totalorder %s16, 3
      %p120 = pnand %p118, %p119
      %p121 = pneg %p120
      // Predicated region
      $region9: #{tpu_custom_call.1} parent=5 // pred_check
        _
      $region10: #{tpu_custom_call.1} parent=5 // pred_check_branch
        %123 = sbr.rel (%p120) target = $region12
      $region11: #{tpu_custom_call.1} parent=5 // pred_region
        %s124 = ssub.s32 %s16, 1
        // Predicated region
        $region13: #{tpu_custom_call.1} parent=11 // pred_check
          %p125 = pneg %p63
        $region14: #{tpu_custom_call.1} parent=11 // pred_check_branch
          %127 = sbr.rel (%p125) target = $region16
        $region15: #{tpu_custom_call.1} parent=11 // pred_region
          %s129 = ssub.s32 4096, 4096
          %130 = vsyncadd [#allocation6], %s129
          %s131 = sshll.u32 [#allocation5], 4
          %s132 = int_to_ptr.vmem [resolvable:$true] %s131
          %137 = dma.hbm_to_vmem [thread:$0]  %s1, 4096, %s132, [#allocation6], 128, 128, 8
        $region16: #{tpu_custom_call.1} parent=11 // pred_fallthru
          _
        // Predicated region
        $region17: #{tpu_custom_call.1} parent=11 // pred_check
          %p138 = pneg %p84
        $region18: #{tpu_custom_call.1} parent=11 // pred_check_branch
          %140 = sbr.rel (%p138) target = $region20
        $region19: #{tpu_custom_call.1} parent=11 // pred_region
          _
        $region20: #{tpu_custom_call.1} parent=11 // pred_fallthru
          _
      $region12: #{tpu_custom_call.1} parent=5 // pred_fallthru
        _
      %p141 = scmp.lt.s32.totalorder %s16, 2
      // Predicated region
      $region21: #{tpu_custom_call.1} parent=5 // pred_check
        %p142 = pneg %p141
      $region22: #{tpu_custom_call.1} parent=5 // pred_check_branch
        %144 = sbr.rel (%p142) target = $region24
      $region23: #{tpu_custom_call.1} parent=5 // pred_region
        // Predicated region
        $region25: #{tpu_custom_call.1} parent=23 // pred_check
          %p145 = pneg %p36
        $region26: #{tpu_custom_call.1} parent=23 // pred_check_branch
          %147 = sbr.rel (%p145) target = $region28
        $region27: #{tpu_custom_call.1} parent=23 // pred_region
          %s148 = sand.u32 %s26, 1
          %s149 = scalar_lea.sflag [#allocation3], %s148
          %s150 = sand.u32 %s26, 1
          %s151 = smul.addr %s150, 8
          %s152 = scalar_lea.vmem [#allocation2], %s151
          %s154 = ssub.s32 128, 128
          %155 = vsyncadd %s149, %s154
          %s156 = smul.addr %s16, 2
          %s157 = smul.addr %s156, 64
          %s158 = scalar_lea.hbm %s0, %s157
          %s160 = sshll.u32 %s152, 4
          %s161 = int_to_ptr.vmem [resolvable:$true] %s160
          %163 = dma.hbm_to_vmem [thread:$0]  %s158, 128, %s161, %s149
        $region28: #{tpu_custom_call.1} parent=23 // pred_fallthru
          _
      $region24: #{tpu_custom_call.1} parent=5 // pred_fallthru
        _
      %p164 = scmp.le.s32.totalorder 1, %s16
      %p165 = scmp.lt.s32.totalorder %s16, 3
      %p166 = pnand %p164, %p165
      %p167 = pneg %p166
      // Predicated region
      $region29: #{tpu_custom_call.1} parent=5 // pred_check
        _
      $region30: #{tpu_custom_call.1} parent=5 // pred_check_branch
        %169 = sbr.rel (%p166) target = $region32
      $region31: #{tpu_custom_call.1} parent=5 // pred_region
        %s170 = ssub.s32 %s16, 1
        %s171 = sand.u32 %s29, 1
        %s172 = scalar_lea.sflag [#allocation3], %s171
        %s173 = sand.u32 %s29, 1
        %s174 = smul.addr %s173, 8
        %s175 = scalar_lea.vmem [#allocation2], %s174
        // Predicated region
        $region33: #{tpu_custom_call.1} parent=31 // pred_check
          %p176 = pneg %p42
        $region34: #{tpu_custom_call.1} parent=31 // pred_check_branch
          %178 = sbr.rel (%p176) target = $region36
        $region35: #{tpu_custom_call.1} parent=31 // pred_region
          %179 = dma.done %s172, 128
        $region36: #{tpu_custom_call.1} parent=31 // pred_fallthru
          _
        // Predicated region
        $region37: #{tpu_custom_call.1} parent=31 // pred_check
          %p180 = pneg %p63
        $region38: #{tpu_custom_call.1} parent=31 // pred_check_branch
          %182 = sbr.rel (%p180) target = $region40
        $region39: #{tpu_custom_call.1} parent=31 // pred_region
          %183 = dma.done [#allocation6], 4096
        $region40: #{tpu_custom_call.1} parent=31 // pred_fallthru
          _
        %s184 = sand.u32 %s29, 1
        %s185 = scalar_lea.sflag [#allocation3], %s184
        %s186 = sand.u32 %s29, 1
        %s187 = smul.addr %s186, 8
        %s188 = scalar_lea.vmem [#allocation2], %s187
        %p189 = pneg %p42
        %p190 = pneg %p39
        %p191 = pneg %p63
        %p192 = pneg %p60
        %p193 = pneg %p84
        %p194 = pneg %p81
        %p195 = pneg %p110
        %p196 = pneg %p107
        %s197 = sand.u32 %s97, 1
        %s198 = scalar_lea.sflag [#allocation4], %s197
        %s199 = sand.u32 %s97, 1
        %s200 = smul.addr %s199, 16
        %s201 = scalar_lea.vmem [#allocation7], %s200
        %v202 = vld [vmem:[%s175] sm:$0xff]
        %v203 = vld [vmem:[#allocation5] sm:$0xff]
        %v204 = vld [vmem:[#allocation5 + $0x8] sm:$0xff]
        %v205 = vld [vmem:[#allocation5 + $0x10] sm:$0xff]
        %v206 = vld [vmem:[#allocation5 + $0x18] sm:$0xff]
        %v207 = vld [vmem:[#allocation5 + $0x20] sm:$0xff]
        %v208 = vld [vmem:[#allocation5 + $0x28] sm:$0xff]
        %v209 = vld [vmem:[#allocation5 + $0x30] sm:$0xff]
        %v210 = vld [vmem:[#allocation5 + $0x38] sm:$0xff]
        %v211 = vld [vmem:[#allocation5 + $0x40] sm:$0xff]
        %v212 = vld [vmem:[#allocation5 + $0x48] sm:$0xff]
        %v213 = vld [vmem:[#allocation5 + $0x50] sm:$0xff]
        %v214 = vld [vmem:[#allocation5 + $0x58] sm:$0xff]
        %v215 = vld [vmem:[#allocation5 + $0x60] sm:$0xff]
        %v216 = vld [vmem:[#allocation5 + $0x68] sm:$0xff]
        %v217 = vld [vmem:[#allocation5 + $0x70] sm:$0xff]
        %v218 = vld [vmem:[#allocation5 + $0x78] sm:$0xff]
        %v219 = vld [vmem:[#allocation5 + $0x80] sm:$0xff]
        %v220 = vld [vmem:[#allocation5 + $0x88] sm:$0xff]
        %v221 = vld [vmem:[#allocation5 + $0x90] sm:$0xff]
        %v222 = vld [vmem:[#allocation5 + $0x98] sm:$0xff]
        %v223 = vld [vmem:[#allocation5 + $0xa0] sm:$0xff]
        %v224 = vld [vmem:[#allocation5 + $0xa8] sm:$0xff]
        %v225 = vld [vmem:[#allocation5 + $0xb0] sm:$0xff]
        %v226 = vld [vmem:[#allocation5 + $0xb8] sm:$0xff]
        %v227 = vld [vmem:[#allocation5 + $0xc0] sm:$0xff]
        %v228 = vld [vmem:[#allocation5 + $0xc8] sm:$0xff]
        %v229 = vld [vmem:[#allocation5 + $0xd0] sm:$0xff]
        %v230 = vld [vmem:[#allocation5 + $0xd8] sm:$0xff]
        %v231 = vld [vmem:[#allocation5 + $0xe0] sm:$0xff]
        %v232 = vld [vmem:[#allocation5 + $0xe8] sm:$0xff]
        %v233 = vld [vmem:[#allocation5 + $0xf0] sm:$0xff]
        %v234 = vld [vmem:[#allocation5 + $0xf8] sm:$0xff]
        %v235 = vld [vmem:[%s2] sm:$0x3]
        %v237 = vlaneseq
        %v238 = vshrl.u32 %v237, 7
        %v239 = vsub.s32 0, %v238
        %v240 = vrot.slane %v235, %v239
        %v241 = vlaneseq
        %v242 = vshrl.u32 %v241, 7
        %v243 = vsub.s32 1, %v242
        %v244 = vrot.slane %v235, %v243
        %v248 = vunpack.c.l.b16 %v202
        %v249 = vunpack.c.h.b16 %v202
        %v250 = vpack.c.b16 %v248, %v248
        %v251 = vpack.c.b16 %v249, %v249
        %v286 = vunpack.c.l.b16 %v203
        %v287 = vunpack.c.h.b16 %v203
        %v288 = vunpack.c.l.b16 %v204
        %v289 = vunpack.c.h.b16 %v204
        %v290 = vunpack.c.l.b16 %v205
        %v291 = vunpack.c.h.b16 %v205
        %v292 = vunpack.c.l.b16 %v206
        %v293 = vunpack.c.h.b16 %v206
        %v294 = vunpack.c.l.b16 %v207
        %v295 = vunpack.c.h.b16 %v207
        %v296 = vunpack.c.l.b16 %v208
        %v297 = vunpack.c.h.b16 %v208
        %v298 = vunpack.c.l.b16 %v209
        %v299 = vunpack.c.h.b16 %v209
        %v300 = vunpack.c.l.b16 %v210
        %v301 = vunpack.c.h.b16 %v210
        %v302 = vunpack.c.l.b16 %v211
        %v303 = vunpack.c.h.b16 %v211
        %v304 = vunpack.c.l.b16 %v212
        %v305 = vunpack.c.h.b16 %v212
        %v306 = vunpack.c.l.b16 %v213
        %v307 = vunpack.c.h.b16 %v213
        %v308 = vunpack.c.l.b16 %v214
        %v309 = vunpack.c.h.b16 %v214
        %v310 = vunpack.c.l.b16 %v215
        %v311 = vunpack.c.h.b16 %v215
        %v312 = vunpack.c.l.b16 %v216
        %v313 = vunpack.c.h.b16 %v216
        %v314 = vunpack.c.l.b16 %v217
        %v315 = vunpack.c.h.b16 %v217
        %v316 = vunpack.c.l.b16 %v218
        %v317 = vunpack.c.h.b16 %v218
        %v318 = vunpack.c.l.b16 %v219
        %v319 = vunpack.c.h.b16 %v219
        %v320 = vunpack.c.l.b16 %v220
        %v321 = vunpack.c.h.b16 %v220
        %v322 = vunpack.c.l.b16 %v221
        %v323 = vunpack.c.h.b16 %v221
        %v324 = vunpack.c.l.b16 %v222
        %v325 = vunpack.c.h.b16 %v222
        %v326 = vunpack.c.l.b16 %v223
        %v327 = vunpack.c.h.b16 %v223
        %v328 = vunpack.c.l.b16 %v224
        %v329 = vunpack.c.h.b16 %v224
        %v330 = vunpack.c.l.b16 %v225
        %v331 = vunpack.c.h.b16 %v225
        %v332 = vunpack.c.l.b16 %v226
        %v333 = vunpack.c.h.b16 %v226
        %v334 = vunpack.c.l.b16 %v227
        %v335 = vunpack.c.h.b16 %v227
        %v336 = vunpack.c.l.b16 %v228
        %v337 = vunpack.c.h.b16 %v228
        %v338 = vunpack.c.l.b16 %v229
        %v339 = vunpack.c.h.b16 %v229
        %v340 = vunpack.c.l.b16 %v230
        %v341 = vunpack.c.h.b16 %v230
        %v342 = vunpack.c.l.b16 %v231
        %v343 = vunpack.c.h.b16 %v231
        %v344 = vunpack.c.l.b16 %v232
        %v345 = vunpack.c.h.b16 %v232
        %v346 = vunpack.c.l.b16 %v233
        %v347 = vunpack.c.h.b16 %v233
        %v348 = vunpack.c.l.b16 %v234
        %v349 = vunpack.c.h.b16 %v234
        %v350 = vpack.c.b16 %v288, %v286
        %v351 = vpack.c.b16 %v289, %v287
        %v352 = vpack.c.b16 %v292, %v290
        %v353 = vpack.c.b16 %v293, %v291
        %v354 = vpack.c.b16 %v296, %v294
        %v355 = vpack.c.b16 %v297, %v295
        %v356 = vpack.c.b16 %v300, %v298
        %v357 = vpack.c.b16 %v301, %v299
        %v358 = vpack.c.b16 %v304, %v302
        %v359 = vpack.c.b16 %v305, %v303
        %v360 = vpack.c.b16 %v308, %v306
        %v361 = vpack.c.b16 %v309, %v307
        %v362 = vpack.c.b16 %v312, %v310
        %v363 = vpack.c.b16 %v313, %v311
        %v364 = vpack.c.b16 %v316, %v314
        %v365 = vpack.c.b16 %v317, %v315
        %v366 = vpack.c.b16 %v320, %v318
        %v367 = vpack.c.b16 %v321, %v319
        %v368 = vpack.c.b16 %v324, %v322
        %v369 = vpack.c.b16 %v325, %v323
        %v370 = vpack.c.b16 %v328, %v326
        %v371 = vpack.c.b16 %v329, %v327
        %v372 = vpack.c.b16 %v332, %v330
        %v373 = vpack.c.b16 %v333, %v331
        %v374 = vpack.c.b16 %v336, %v334
        %v375 = vpack.c.b16 %v337, %v335
        %v376 = vpack.c.b16 %v340, %v338
        %v377 = vpack.c.b16 %v341, %v339
        %v378 = vpack.c.b16 %v344, %v342
        %v379 = vpack.c.b16 %v345, %v343
        %v380 = vpack.c.b16 %v348, %v346
        %v381 = vpack.c.b16 %v349, %v347
        %414 = vmatprep.subr.bf16.mxu0 %v351
        %415 = vmatpush1.bf16.msra.mxu0 %v350
        %416 = vmatprep.subr.bf16.mxu0 %v353
        %417 = vmatpush1.bf16.msra.mxu0 %v352
        %418 = vmatprep.subr.bf16.mxu0 %v355
        %419 = vmatpush1.bf16.msra.mxu0 %v354
        %420 = vmatprep.subr.bf16.mxu0 %v357
        %421 = vmatpush1.bf16.msra.mxu0 %v356
        %422 = vmatprep.subr.bf16.mxu0 %v359
        %423 = vmatpush1.bf16.msra.mxu0 %v358
        %424 = vmatprep.subr.bf16.mxu0 %v361
        %425 = vmatpush1.bf16.msra.mxu0 %v360
        %426 = vmatprep.subr.bf16.mxu0 %v363
        %427 = vmatpush1.bf16.msra.mxu0 %v362
        %428 = vmatprep.subr.bf16.mxu0 %v365
        %429 = vmatpush1.bf16.msra.mxu0 %v364
        %430 = vmatprep.subr.bf16.mxu0 %v367
        %431 = vmatpush1.bf16.msra.mxu0 %v366
        %432 = vmatprep.subr.bf16.mxu0 %v369
        %433 = vmatpush1.bf16.msra.mxu0 %v368
        %434 = vmatprep.subr.bf16.mxu0 %v371
        %435 = vmatpush1.bf16.msra.mxu0 %v370
        %436 = vmatprep.subr.bf16.mxu0 %v373
        %437 = vmatpush1.bf16.msra.mxu0 %v372
        %438 = vmatprep.subr.bf16.mxu0 %v375
        %439 = vmatpush1.bf16.msra.mxu0 %v374
        %440 = vmatprep.subr.bf16.mxu0 %v377
        %441 = vmatpush1.bf16.msra.mxu0 %v376
        %442 = vmatprep.subr.bf16.mxu0 %v379
        %443 = vmatpush1.bf16.msra.mxu0 %v378
        %444 = vmatprep.subr.bf16.mxu0 %v381
        %445 = vmatpush1.bf16.msra.mxu0 %v380
        %446 = vmatprep.mubr.bf16.mxu0 %v251
        %447 = vmatmul.mubr.bf16.gmra.mrb[0].mxu0 %v250
        %v448 = vpop.f32.mrb[0].mxu0
        %v449 = vadd.f32 %v240, %v448
        %v450 = vpop.f32.mrb[0].mxu0
        %v451 = vadd.f32 %v244, %v450
        %v452 = vpop.f32.mrb[0].mxu0
        %v453 = vpop.f32.mrb[0].mxu0
        %454 = vdwg.mxu0
        %455 = vst [vmem:[%s201] sm:$0xff] %v449
        %456 = vst [vmem:[%s201 + $0x8] sm:$0xff] %v451
        %s457 = sand.u32 %s97, 1
        %s458 = scalar_lea.sflag [#allocation4], %s457
        %s459 = sand.u32 %s97, 1
        %s460 = smul.addr %s459, 16
        %s461 = scalar_lea.vmem [#allocation7], %s460
        // Predicated region
        $region41: #{tpu_custom_call.1} parent=31 // pred_check
          %p462 = pneg %p107
        $region42: #{tpu_custom_call.1} parent=31 // pred_check_branch
          %464 = sbr.rel (%p462) target = $region44
        $region43: #{tpu_custom_call.1} parent=31 // pred_region
          %s466 = ssub.s32 256, 256
          %467 = vsyncadd %s458, %s466
          %s468 = smul.addr %s21, 2
          %s469 = smul.addr %s468, 128
          %s470 = scalar_lea.hbm %s3, %s469
          %s472 = sshll.u32 %s461, 4
          %s473 = int_to_ptr.vmem [resolvable:$true] %s472
          %475 = dma.vmem_to_hbm [thread:$0]  %s473, 256, %s470, %s458
        $region44: #{tpu_custom_call.1} parent=31 // pred_fallthru
          _
      $region32: #{tpu_custom_call.1} parent=5 // pred_fallthru
        _
      %p476 = scmp.le.s32.totalorder 2, %s16
      // Predicated region
      $region45: #{tpu_custom_call.1} parent=5 // pred_check
        %p477 = pneg %p476
      $region46: #{tpu_custom_call.1} parent=5 // pred_check_branch
        %479 = sbr.rel (%p477) target = $region48
      $region47: #{tpu_custom_call.1} parent=5 // pred_region
        %s480 = ssub.s32 %s16, 2
        // Predicated region
        $region49: #{tpu_custom_call.1} parent=47 // pred_check
          %p481 = pneg %p113
        $region50: #{tpu_custom_call.1} parent=47 // pred_check_branch
          %483 = sbr.rel (%p481) target = $region52
        $region51: #{tpu_custom_call.1} parent=47 // pred_region
          %s484 = sand.u32 %s98, 1
          %s485 = scalar_lea.sflag [#allocation4], %s484
          %s486 = sand.u32 %s98, 1
          %s487 = smul.addr %s486, 16
          %s488 = scalar_lea.vmem [#allocation7], %s487
          %489 = dma.done %s485, 256
        $region52: #{tpu_custom_call.1} parent=47 // pred_fallthru
          _
      $region48: #{tpu_custom_call.1} parent=5 // pred_fallthru
        _
    $region6: #{tpu_custom_call.1} parent=1 // loop_footer
      %s20 = sadd.s32 1, %s16
    $region7: #{tpu_custom_call.1} parent=1 // loop_footer_branch
      %15 = sbr.rel target = $region3
    $region8: #{tpu_custom_call.1} parent=1 // loop_exit
      _
    %490 = vsyncpa [#allocation3], 1
    %s491 = scalar_lea.sflag [#allocation3], 1
    %492 = vsyncpa %s491, 1
    %493 = vsyncpa [#allocation6], 1
    %494 = vsyncpa [#allocation4], 1
    %s495 = scalar_lea.sflag [#allocation4], 1
    %496 = vsyncpa %s495, 1

</llo_original>
